<compile_context>
chip_gen: v5e
topology: v5e:2x2
jax: 0.10.0
libtpu: 0.0.40
codegen_flags: <defaults>
</compile_context>

<pallas_src>
import math
import functools

import jax
import jax.numpy as jnp
from jax import lax
from jax.experimental import pallas as pl
from jax.experimental.pallas import tpu as pltpu


def _round_up(x, m):
    return ((x + m - 1) // m) * m


def _vmem_capacity_bytes():
    try:
        return int(pltpu.get_tpu_info().vmem_capacity_bytes)
    except Exception:
        return 64 * 1024 * 1024          # conservative (v7x per-TC VMEM)


def _vmem_limit_bytes(capacity):
    # Raise the scoped-VMEM limit (defaults are 16/32 MiB) but keep headroom.
    return int(0.75 * capacity)


def _largest_divisor_leq(n, cap):
    cap = max(1, min(n, cap))
    for d in range(cap, 0, -1):
        if n % d == 0:
            return d
    return 1


# ----------------------------------------------------------------------------
# Kernel 1: matmul + bias, tiled over rows (fused QKV 1x1 conv).  bf16 MXU
# inputs, f32 accumulation; output width padded to a 128 multiple.
# ----------------------------------------------------------------------------
def _matmul_bias_kernel(x_ref, w_ref, b_ref, o_ref):
    acc = jnp.dot(x_ref[...], w_ref[...], preferred_element_type=jnp.float32)
    acc = acc + b_ref[...]
    o_ref[...] = acc.astype(o_ref.dtype)


def matmul_bias(x, w, b, *, tm=512, out_dtype=None):
    """x: (M, K), w: (K, N), b: (N,) f32.  Returns x @ w + b, shape (M, N)."""
    M, K = x.shape
    _, N = w.shape
    out_dtype = out_dtype or x.dtype
    Ncp = _round_up(N, 128)                       # lane-dense output stores
    if Ncp != N:
        w = jnp.pad(w, ((0, 0), (0, Ncp - N)))
        b = jnp.pad(b, (0, Ncp - N))
    tm = min(tm, _round_up(M, 8))
    Mp = _round_up(M, tm)
    x_p = jnp.pad(x, ((0, Mp - M), (0, 0))) if Mp != M else x
    capacity = _vmem_capacity_bytes()
    out = pl.pallas_call(
        _matmul_bias_kernel,
        out_shape=jax.ShapeDtypeStruct((Mp, Ncp), out_dtype),
        grid=(Mp // tm,),
        in_specs=[
            pl.BlockSpec((tm, K), lambda i: (i, 0)),
            pl.BlockSpec((K, Ncp), lambda i: (0, 0)),
            pl.BlockSpec((1, Ncp), lambda i: (0, 0)),
        ],
        out_specs=pl.BlockSpec((tm, Ncp), lambda i: (i, 0)),
        compiler_params=pltpu.CompilerParams(
            dimension_semantics=("parallel",),
            vmem_limit_bytes=_vmem_limit_bytes(capacity)),
        cost_estimate=pl.CostEstimate(
            flops=int(2 * Mp * K * Ncp),
            transcendentals=0,
            bytes_accessed=int(x_p.dtype.itemsize * Mp * K
                               + w.dtype.itemsize * K * Ncp + 4 * Ncp
                               + jnp.dtype(out_dtype).itemsize * Mp * Ncp)),
    )(x_p, w, b.reshape(1, Ncp))
    return out[:M, :N]


# ----------------------------------------------------------------------------
# Kernel 2: scaled-dot-product attention, tiled over (batch, query-row tiles).
# K/V stay resident across the inner query-tile axis (the pipeliner skips the
# re-DMA when the block index is unchanged).  Keys padded to a lane multiple
# and masked in-kernel; user hole-mask (1 -> masked) broadcast over rows.
# ----------------------------------------------------------------------------
def _attn_kernel(*refs, scale, has_mask, return_attn, n_keys):
    q_ref, k_ref, v_ref = refs[0], refs[1], refs[2]
    i = 3
    m_ref = None
    if has_mask:
        m_ref = refs[i]
        i += 1
    y_ref = refs[i]
    i += 1
    p_ref = refs[i] if return_attn else None

    q = q_ref[0] * scale                           # fold 1/sqrt(D) into (TQ, Dp)
    k = k_ref[0]                                   # (Nk, Dp) bf16
    v = v_ref[0]                                   # (Nk, Dp) bf16
    # q @ k^T without materializing a (Nk, Dp) -> (Dp, Nk) transpose per tile.
    scores = lax.dot_general(q, k, (((1,), (1,)), ((), ())),
                             preferred_element_type=jnp.float32)  # (TQ, Nk) f32
    nk = scores.shape[-1]
    if n_keys < nk:                                # static: mask zero-padded keys
        key_idx = lax.broadcasted_iota(jnp.int32, scores.shape, 1)
        scores = jnp.where(key_idx >= n_keys, jnp.float32(-3e9), scores)
    if m_ref is not None:                          # hole mask: 1 -> masked
        scores = jnp.where(m_ref[0] > 0.5, jnp.float32(-1e9), scores)
    s_max = jnp.max(scores, axis=-1, keepdims=True)
    e = jnp.exp(scores - s_max)
    denom = jnp.sum(e, axis=-1, keepdims=True)
    p = e / denom                                  # exact row normalization
    y_ref[0] = jnp.dot(p.astype(v.dtype), v,
                       preferred_element_type=jnp.float32).astype(y_ref.dtype)
    if p_ref is not None:
        p_ref[0] = p.astype(p_ref.dtype)


def _choose_attention_tq(N, Nk, Dp, capacity, return_attn, tq_max):
    """Largest query-row tile whose VMEM footprint fits the scoped budget."""
    budget = int(0.55 * capacity)
    fixed = 2 * (2 * Nk * Dp * 2)          # K + V resident, double-buffered, bf16
    chosen = 8
    for tq in (256, 128, 64, 32, 16, 8):
        if tq > tq_max:
            continue
        per = 2 * tq * Dp * 2              # Q tile (bf16, double-buffered)
        per += 2 * tq * Dp * 4             # Y tile (f32,  double-buffered)
        if return_attn:
            per += 2 * tq * Nk * 2         # P tile (bf16, double-buffered)
        per += 6 * tq * Nk * 4             # scores / exp / working set (f32)
        if fixed + per <= budget:
            chosen = tq
            break
    return max(8, min(chosen, _round_up(N, 8)))


def attention(q, k, v, mask=None, *, return_attn=True, tq_max=256,
              out_dtype=jnp.float32, attn_dtype=jnp.bfloat16):
    """q, k, v: (B, N, D); mask: None or (B, 1, N) {0,1} (1 = masked key)."""
    B, N, D = q.shape
    scale = 1.0 / math.sqrt(D)
    Dp = _round_up(D, 128)                 # lane-dense feature dim (zero pad exact)
    Nk = _round_up(N, 128)                 # lane-dense key axis
    capacity = _vmem_capacity_bytes()
    # TODO(synk): tq_max=128 is preferable on v5e (1 vst slot, 16 MiB default).
    TQ = _choose_attention_tq(N, Nk, Dp, capacity, return_attn, tq_max)
    Np = _round_up(N, TQ)

    def pad3(a, n_to, d_to):
        pn, pd = n_to - a.shape[1], d_to - a.shape[2]
        return jnp.pad(a, ((0, 0), (0, pn), (0, pd))) if (pn or pd) else a

    # TODO(synk): at production shapes fold these pads into the token-izing
    # transpose in _to_patches_nhwc to avoid a standalone HBM pad pass.
    q_p = pad3(q, Np, Dp)
    k_p = pad3(k, Nk, Dp)
    v_p = pad3(v, Nk, Dp)

    has_mask = mask is not None
    inputs = [q_p, k_p, v_p]
    in_specs = [
        pl.BlockSpec((1, TQ, Dp), lambda bi, qi: (bi, qi, 0)),
        # K/V block index is constant along the inner qi axis, so they are
        # only re-DMA'd when bi changes.  (pl.Buffered(1) would also drop the
        # second buffer on VMEM-tight parts; left at default for portability.)
        pl.BlockSpec((1, Nk, Dp), lambda bi, qi: (bi, 0, 0)),
        pl.BlockSpec((1, Nk, Dp), lambda bi, qi: (bi, 0, 0)),
    ]
    if has_mask:
        mfull = mask.astype(jnp.float32).reshape(B, 1, N)
        if Nk != N:
            mfull = jnp.pad(mfull, ((0, 0), (0, 0), (0, Nk - N)))
        inputs.append(mfull)
        in_specs.append(pl.BlockSpec((1, 1, Nk), lambda bi, qi: (bi, 0, 0)))

    out_shape = [jax.ShapeDtypeStruct((B, Np, Dp), out_dtype)]
    out_specs = [pl.BlockSpec((1, TQ, Dp), lambda bi, qi: (bi, qi, 0))]
    if return_attn:
        out_shape.append(jax.ShapeDtypeStruct((B, Np, Nk), attn_dtype))
        out_specs.append(pl.BlockSpec((1, TQ, Nk), lambda bi, qi: (bi, qi, 0)))

    flops = 4 * B * Np * Nk * Dp
    trans = B * Np * Nk
    bytes_acc = (2 * B * Np * Dp                 # q bf16
                 + 2 * 2 * B * Nk * Dp           # k, v bf16
                 + (4 * B * Nk if has_mask else 0)
                 + 4 * B * Np * Dp               # y f32
                 + (2 * B * Np * Nk if return_attn else 0))

    # TODO(synk): when return_attn=False, a flash-style online-softmax variant
    # streaming K/V tiles would reduce the resident footprint further on v7x.
    outs = pl.pallas_call(
        functools.partial(_attn_kernel, scale=scale, has_mask=has_mask,
                          return_attn=return_attn, n_keys=N),
        out_shape=tuple(out_shape),
        grid=(B, Np // TQ),
        in_specs=in_specs,
        out_specs=tuple(out_specs),
        compiler_params=pltpu.CompilerParams(
            dimension_semantics=("parallel", "parallel"),
            vmem_limit_bytes=_vmem_limit_bytes(capacity)),
        cost_estimate=pl.CostEstimate(flops=int(flops), transcendentals=int(trans),
                                      bytes_accessed=int(bytes_acc)),
    )(*inputs)

    y = outs[0][:, :N, :D]
    p = outs[1][:, :N, :N] if return_attn else None
    return y, p


# ----------------------------------------------------------------------------
# Kernel 3: 3x3 conv (NHWC) + LeakyReLU via 9 accumulated bf16 matmuls.
# Several images per grid step; dx slice hoisted out of the dy loop.
# ----------------------------------------------------------------------------
def _conv3x3_leaky_kernel(x_ref, w_ref, b_ref, o_ref, *, nb, h, w, slope):
    xblk = x_ref[...]                              # (nb, h+2, w+2, cin) bf16
    cin = xblk.shape[-1]
    cout = o_ref.shape[-1]
    acc = jnp.zeros((nb * h * w, cout), jnp.float32)
    for dx in range(3):                            # one sublane-offset slice per dx
        xs = xblk[:, :, dx:dx + w, :]              # (nb, h+2, w, cin)
        for dy in range(3):
            tap = xs[:, dy:dy + h, :, :].reshape(nb * h * w, cin)
            acc = acc + jnp.dot(tap, w_ref[dy, dx],
                                preferred_element_type=jnp.float32)
    acc = acc + b_ref[...]
    acc = jnp.where(acc >= 0, acc, jnp.float32(slope) * acc)
    o_ref[...] = acc.reshape(nb, h, w, cout).astype(o_ref.dtype)


def conv3x3_leaky(x_nhwc, w_hwio, bias, *, slope=0.2, out_dtype=jnp.float32):
    """x: (BT, H, W, Cin), w: (3, 3, Cin, Cout), bias: (Cout,) f32."""
    bt, h, w, cin = x_nhwc.shape
    cout = w_hwio.shape[-1]
    coutp = _round_up(cout, 128)                   # lane-dense output stores
    if coutp != cout:
        w_hwio = jnp.pad(w_hwio, ((0, 0), (0, 0), (0, 0), (0, coutp - cout)))
        bias = jnp.pad(bias, (0, coutp - cout))
    w_bf = w_hwio.astype(jnp.bfloat16)
    x_pad = jnp.pad(x_nhwc.astype(jnp.bfloat16), ((0, 0), (1, 1), (1, 1), (0, 0)))

    capacity = _vmem_capacity_bytes()
    # Pack several images per grid step when frames are small (amortizes the
    # ~0.35us/step overhead, deeper MXU M = nb*h*w), bounded by VMEM budget.
    per_img = (2 * 2 * (h + 2) * (w + 2) * cin     # input bf16, double-buffered
               + 2 * 4 * h * w * coutp             # output f32, double-buffered
               + 4 * h * w * coutp                 # f32 accumulator
               + 2 * h * w * cin)                  # tap temporaries
    cap = min(max(1, 4096 // max(1, h * w)),
              max(1, int(0.5 * capacity) // max(1, per_img)))
    nb = _largest_divisor_leq(bt, cap)
    # TODO(synk): spatial (row-tile + halo) tiling for very large frames where
    # one padded image no longer fits the scoped VMEM budget.

    out = pl.pallas_call(
        functools.partial(_conv3x3_leaky_kernel, nb=nb, h=h, w=w, slope=slope),
        out_shape=jax.ShapeDtypeStruct((bt, h, w, coutp), out_dtype),
        grid=(bt // nb,),
        in_specs=[
            pl.BlockSpec((nb, h + 2, w + 2, cin), lambda n: (n, 0, 0, 0)),
            pl.BlockSpec((3, 3, cin, coutp), lambda n: (0, 0, 0, 0)),
            pl.BlockSpec((1, coutp), lambda n: (0, 0)),
        ],
        out_specs=pl.BlockSpec((nb, h, w, coutp), lambda n: (n, 0, 0, 0)),
        compiler_params=pltpu.CompilerParams(
            dimension_semantics=("parallel",),
            vmem_limit_bytes=_vmem_limit_bytes(capacity)),
        cost_estimate=pl.CostEstimate(
            flops=int(2 * bt * h * w * 9 * cin * coutp),
            transcendentals=0,
            bytes_accessed=int(2 * bt * (h + 2) * (w + 2) * cin
                               + 2 * 9 * cin * coutp + 4 * coutp
                               + 4 * bt * h * w * coutp)),
    )(x_pad, w_bf, bias.reshape(1, coutp))
    return out[..., :cout]


# ----------------------------------------------------------------------------
# Patch <-> token reshapes (layout plumbing only).  Feature ordering inside a
# patch token is (d_k, height, width), matching permute(0,1,3,5,2,4,6) on NCHW.
# ----------------------------------------------------------------------------
def _to_patches_nhwc(x_hw_c, b, t, d_k, out_h, height, out_w, width):
    # (b*t, h, w, d_k) -> (b, t*out_h*out_w, d_k*height*width)
    y = x_hw_c.reshape(b, t, out_h, height, out_w, width, d_k)
    y = jnp.transpose(y, (0, 1, 2, 4, 6, 3, 5))
    return y.reshape(b, t * out_h * out_w, d_k * height * width)


def _from_patches_nhwc(y, b, t, d_k, out_h, height, out_w, width):
    # (b, t*out_h*out_w, d_k*height*width) -> (b*t, h, w, d_k)
    y = y.reshape(b, t, out_h, out_w, d_k, height, width)
    y = jnp.transpose(y, (0, 1, 2, 5, 3, 6, 4))
    return y.reshape(b * t, out_h * height, out_w * width, d_k)


# NCHW helpers (pure-JAX reference path only)
def _to_patches_nchw(x_chunk, b, t, d_k, out_h, height, out_w, width):
    y = x_chunk.reshape(b, t, d_k, out_h, height, out_w, width)
    y = jnp.transpose(y, (0, 1, 3, 5, 2, 4, 6))
    return y.reshape(b, t * out_h * out_w, d_k * height * width)


def _from_patches_nchw(y, b, t, d_k, out_h, height, out_w, width):
    y = y.reshape(b, t, out_h, out_w, d_k, height, width)
    y = jnp.transpose(y, (0, 1, 4, 2, 5, 3, 6))
    return y.reshape(b * t, d_k, out_h * height, out_w * width)


# ----------------------------------------------------------------------------
# Forward pass (glue: reshapes/permutes; compute: the three Pallas kernels)
# ----------------------------------------------------------------------------
def multi_headed_attention_forward(params, x, m, b, c, patchsize, *,
                                   return_attn=True):
    """x: (b*t, c, h, w) NCHW f32.  m: None or (b*t, 1, h, w).  Returns (out, attn)."""
    bt, _, h, w = x.shape
    t = bt // b
    d_k = c // len(patchsize)

    # ---- fused Q/K/V 1x1 convs: one wide bf16 matmul, x read from HBM once ----
    x_nhwc = jnp.transpose(x, (0, 2, 3, 1))                  # (bt, h, w, c)
    xf = x_nhwc.reshape(bt * h * w, c).astype(jnp.bfloat16)
    w_qkv = jnp.concatenate([params["wq"], params["wk"], params["wv"]],
                            axis=0).T.astype(jnp.bfloat16)   # (c, 3c)
    b_qkv = jnp.concatenate([params["bq"], params["bk"], params["bv"]], axis=0)
    qkv = matmul_bias(xf, w_qkv, b_qkv,
                      out_dtype=jnp.bfloat16).reshape(bt, h, w, 3 * c)
    _query = qkv[..., 0 * c:1 * c]
    _key = qkv[..., 1 * c:2 * c]
    _value = qkv[..., 2 * c:3 * c]

    output = []
    attn = []
    for idx, (width, height) in enumerate(patchsize):
        out_w, out_h = w // width, h // height
        N = t * out_h * out_w
        lo, hi = idx * d_k, (idx + 1) * d_k

        q = _to_patches_nhwc(_query[..., lo:hi], b, t, d_k, out_h, height, out_w, width)
        k = _to_patches_nhwc(_key[..., lo:hi], b, t, d_k, out_h, height, out_w, width)
        v = _to_patches_nhwc(_value[..., lo:hi], b, t, d_k, out_h, height, out_w, width)

        if m is not None:
            mm = m.reshape(b, t, 1, out_h, height, out_w, width)
            mm = jnp.transpose(mm, (0, 1, 3, 5, 2, 4, 6)).reshape(b, N, height * width)
            # hole-mask convention (STTN Attention: masked_fill(mask, -1e9)):
            # value 1 / True -> key token is a hole -> excluded from attention.
            mask = (jnp.mean(mm, axis=-1) > 0.5).astype(jnp.float32).reshape(b, 1, N)
        else:
            mask = None   # no mask input at all on the unmasked path

        y, p_attn = attention(q, k, v, mask, return_attn=return_attn)
        output.append(_from_patches_nhwc(y, b, t, d_k, out_h, height, out_w, width))
        attn.append(p_attn)

    output_nhwc = jnp.concatenate(output, axis=-1)           # (bt, h, w, c) f32

    # ---- output_linear: fused 3x3 conv taps + LeakyReLU(0.2) ----
    w_hwio = jnp.transpose(params["wo"], (2, 3, 1, 0))       # OIHW -> HWIO
    out_nhwc = conv3x3_leaky(output_nhwc, w_hwio, params["bo"], slope=0.2)
    x_out = jnp.transpose(out_nhwc, (0, 3, 1, 2))            # back to NCHW
    return x_out, attn


# ----------------------------------------------------------------------------
# Pure-JAX f32 reference (for correctness check)
# ----------------------------------------------------------------------------
def reference_forward(params, x, m, b, c, patchsize):
    bt, _, h, w = x.shape
    t = bt // b
    d_k = c // len(patchsize)

    def conv1x1(xx, w_oi, bias):
        return jnp.einsum("nchw,oc->nohw", xx, w_oi) + bias[None, :, None, None]

    _query = conv1x1(x, params["wq"], params["bq"])
    _key = conv1x1(x, params["wk"], params["bk"])
    _value = conv1x1(x, params["wv"], params["bv"])

    output, attn = [], []
    for idx, (width, height) in enumerate(patchsize):
        out_w, out_h = w // width, h // height
        lo, hi = idx * d_k, (idx + 1) * d_k
        q = _to_patches_nchw(_query[:, lo:hi], b, t, d_k, out_h, height, out_w, width)
        k = _to_patches_nchw(_key[:, lo:hi], b, t, d_k, out_h, height, out_w, width)
        v = _to_patches_nchw(_value[:, lo:hi], b, t, d_k, out_h, height, out_w, width)
        D = q.shape[-1]
        scores = jnp.einsum("bnd,bmd->bnm", q, k) / math.sqrt(D)
        if m is not None:
            N = q.shape[1]
            mm = m.reshape(b, t, 1, out_h, height, out_w, width)
            mm = jnp.transpose(mm, (0, 1, 3, 5, 2, 4, 6)).reshape(b, N, height * width)
            mm = (jnp.mean(mm, axis=-1) > 0.5)
            scores = jnp.where(mm[:, None, :], -1e9, scores)
        p = jax.nn.softmax(scores, axis=-1)
        y = jnp.einsum("bnm,bmd->bnd", p, v)
        output.append(_from_patches_nchw(y, b, t, d_k, out_h, height, out_w, width))
        attn.append(p)
    output = jnp.concatenate(output, axis=1)
    conv = jax.lax.conv_general_dilated(
        output, params["wo"], window_strides=(1, 1), padding=((1, 1), (1, 1)),
        dimension_numbers=("NCHW", "OIHW", "NCHW"))
    conv = conv + params["bo"][None, :, None, None]
    x_out = jnp.where(conv >= 0, conv, 0.2 * conv)
    return x_out, attn


# ----------------------------------------------------------------------------
if __name__ == "__main__":
    b, t, c, h, w = 2, 2, 8, 8, 8
    bt = b * t
    patchsize = [(4, 4), (2, 2)]   # list of (width, height); d_k = c // len = 4

    key = jax.random.PRNGKey(0)
    ks = jax.random.split(key, 10)
    params = {
        "wq": 0.1 * jax.random.normal(ks[0], (c, c), jnp.float32),
        "bq": 0.1 * jax.random.normal(ks[1], (c,), jnp.float32),
        "wk": 0.1 * jax.random.normal(ks[2], (c, c), jnp.float32),
        "bk": 0.1 * jax.random.normal(ks[3], (c,), jnp.float32),
        "wv": 0.1 * jax.random.normal(ks[4], (c, c), jnp.float32),
        "bv": 0.1 * jax.random.normal(ks[5], (c,), jnp.float32),
        "wo": 0.1 * jax.random.normal(ks[6], (c, c, 3, 3), jnp.float32),
        "bo": 0.1 * jax.random.normal(ks[7], (c,), jnp.float32),
    }
    x = jax.random.normal(ks[8], (bt, c, h, w), jnp.float32)
    m = (jax.random.uniform(ks[9], (bt, 1, h, w)) > 0.5).astype(jnp.float32)

    # Exercise both the unmasked and the (hole-)masked paths.
    # Tolerances reflect bf16 MXU inputs vs the pure-f32 reference.
    for mask_in in (None, m):
        out, attn = multi_headed_attention_forward(params, x, mask_in, b, c, patchsize)
        out = jax.block_until_ready(out)
        attn = [jax.block_until_ready(a) for a in attn]

        ref_out, ref_attn = reference_forward(params, x, mask_in, b, c, patchsize)
        assert jnp.allclose(out.astype(jnp.float32), ref_out,
                            rtol=5e-2, atol=1e-2), "output mismatch"
        for a, ra in zip(attn, ref_attn):
            assert jnp.allclose(a.astype(jnp.float32), ra,
                                rtol=5e-2, atol=5e-3), "attention mismatch"

    print("KERNEL_OK")
</pallas_src>

<mosaic_0001>
module attributes {stable_mosaic.version = 11 : i64} {
  func.func @_matmul_bias_kernel(%arg0: i32, %arg1: memref<256x8xbf16, #tpu.memory_space<vmem>>, %arg2: memref<8x128xbf16, #tpu.memory_space<vmem>>, %arg3: memref<1x128xf32, #tpu.memory_space<vmem>>, %arg4: memref<256x128xbf16, #tpu.memory_space<vmem>>) attributes {dimension_semantics = [#tpu.dimension_semantics<parallel>], iteration_bounds = array<i64: 1>, scalar_prefetch = 0 : i64, scratch_operands = 0 : i64, tpu.core_type = #tpu.core_type<tc>, window_params = [{transform_indices = @transform_0, window_bounds = array<i64: 256, 8>}, {pipeline_mode = #tpu.pipeline_mode<synchronous>, transform_indices = @transform_1, window_bounds = array<i64: 8, 128>}, {pipeline_mode = #tpu.pipeline_mode<synchronous>, transform_indices = @transform_2, window_bounds = array<i64: 1, 128>}, {transform_indices = @transform_3, window_bounds = array<i64: 256, 128>}]} {
    %c0 = arith.constant 0 : index
    %c0_0 = arith.constant 0 : index
    %0 = vector.load %arg1[%c0, %c0_0] : memref<256x8xbf16, #tpu.memory_space<vmem>>, vector<256x8xbf16>
    %c0_1 = arith.constant 0 : index
    %c0_2 = arith.constant 0 : index
    %1 = vector.load %arg2[%c0_1, %c0_2] : memref<8x128xbf16, #tpu.memory_space<vmem>>, vector<8x128xbf16>
    %cst = arith.constant dense<0.000000e+00> : vector<256x128xf32>
    %2 = tpu.matmul %0, %1, %cst {dimension_numbers = #tpu.dot_dimension_numbers<[1], [0], [0], [1], [0, 0, 1, 1], [], []>} : vector<256x8xbf16>, vector<8x128xbf16>, vector<256x128xf32> -> vector<256x128xf32>
    %c0_3 = arith.constant 0 : index
    %c0_4 = arith.constant 0 : index
    %3 = vector.load %arg3[%c0_3, %c0_4] : memref<1x128xf32, #tpu.memory_space<vmem>>, vector<1x128xf32>
    %4 = vector.broadcast %3 : vector<1x128xf32> to vector<256x128xf32>
    %5 = arith.addf %2, %4 : vector<256x128xf32>
    %6 = arith.truncf %5 : vector<256x128xf32> to vector<256x128xbf16>
    %c0_5 = arith.constant 0 : index
    %c0_6 = arith.constant 0 : index
    %7 = vector.load %arg4[%c0_5, %c0_6] : memref<256x128xbf16, #tpu.memory_space<vmem>>, vector<256x128xbf16>
    tpu.vector_store %arg4[%c0_5, %c0_6], %6 {strides = array<i32>} : memref<256x128xbf16, #tpu.memory_space<vmem>>, vector<256x128xbf16>,
    return
  }
  func.func @transform_0(%arg0: i32) -> (i32, i32) {
    %c0_i32 = arith.constant 0 : i32
    %c0_i32_0 = arith.constant 0 : i32
    return %arg0, %c0_i32 : i32, i32
  }
  func.func @transform_1(%arg0: i32) -> (i32, i32) {
    %c0_i32 = arith.constant 0 : i32
    %c0_i32_0 = arith.constant 0 : i32
    %c0_i32_1 = arith.constant 0 : i32
    return %c0_i32, %c0_i32_0 : i32, i32
  }
  func.func @transform_2(%arg0: i32) -> (i32, i32) {
    %c0_i32 = arith.constant 0 : i32
    %c0_i32_0 = arith.constant 0 : i32
    %c0_i32_1 = arith.constant 0 : i32
    return %c0_i32, %c0_i32_0 : i32, i32
  }
  func.func @transform_3(%arg0: i32) -> (i32, i32) {
    %c0_i32 = arith.constant 0 : i32
    %c0_i32_0 = arith.constant 0 : i32
    return %arg0, %c0_i32 : i32, i32
  }
}

</mosaic_0001>

<llo_original>
// kernel: tpu_custom_call.1
$region0: #{tpu_custom_call.1}
  #allocation0 [shape = 'u32[]', space=smem, size = 0x4, offset = 0x4, fixed_abs, tag = 'smem constant byte address 0x4 - core index']
  #allocation1 [shape = 'u32[72,128]{1,0:T(1,128)}', space=vmem, size = 0x9000, scoped, tag = 'internal scratch']
  %s0 = inlined_call_operand.vmem [shape: bf16[256,8], index: 0, kind: input, shape index: {}]
  %s1 = inlined_call_operand.vmem [shape: bf16[8,128], index: 1, kind: input, shape index: {}]
  %s2 = inlined_call_operand.vmem [shape: f32[1,128], index: 2, kind: input, shape index: {}]
  %s3 = inlined_call_operand.hbm [shape: bf16[256,128], index: 3, kind: output, shape index: {}]
  %s4 = sld [smem:[#allocation0]]
  $region22: #{tpu_custom_call.1} parent=0
    _
  %s6 = ssub.s32 1, %s4
  %s7 = scalar_select 0, %s6, %s4
  $region1: #{tpu_custom_call.1} parent=0
    #allocation2 [shape = 'u8[65536]{0}', space=vmem, size = 0x10000, scoped, tag = 'output window, operand 0, single buffered']
    #allocation3 [shape = 's32[1]{0}', space=sflag, size = 0x4, scoped, tag = 'scoped memory for tpu_custom_call.1']
    %8 = vsyncpa [#allocation3], 0
    // Predicated region
    $region2: #{tpu_custom_call.1} parent=1 // pred_check
      _
    $region3: #{tpu_custom_call.1} parent=1 // pred_check_branch
      %10 = sbr.rel (0) target = $region5
    $region4: #{tpu_custom_call.1} parent=1 // pred_region
      _
    $region5: #{tpu_custom_call.1} parent=1 // pred_fallthru
      _
    // Predicated region
    $region6: #{tpu_custom_call.1} parent=1 // pred_check
      _
    $region7: #{tpu_custom_call.1} parent=1 // pred_check_branch
      %12 = sbr.rel (0) target = $region9
    $region8: #{tpu_custom_call.1} parent=1 // pred_region
      _
    $region9: #{tpu_custom_call.1} parent=1 // pred_fallthru
      _
    // Predicated region
    $region10: #{tpu_custom_call.1} parent=1 // pred_check
      _
    $region11: #{tpu_custom_call.1} parent=1 // pred_check_branch
      %14 = sbr.rel (0) target = $region13
    $region12: #{tpu_custom_call.1} parent=1 // pred_region
      _
    $region13: #{tpu_custom_call.1} parent=1 // pred_fallthru
      _
    %v16 = vld [vmem:[%s0] sm:$0xf]
    %v17 = vld [vmem:[%s0 + $0x4] sm:$0xf]
    %v18 = vld [vmem:[%s0 + $0x8] sm:$0xf]
    %v19 = vld [vmem:[%s0 + $0xc] sm:$0xf]
    %v20 = vld [vmem:[%s0 + $0x10] sm:$0xf]
    %v21 = vld [vmem:[%s0 + $0x14] sm:$0xf]
    %v22 = vld [vmem:[%s0 + $0x18] sm:$0xf]
    %v23 = vld [vmem:[%s0 + $0x1c] sm:$0xf]
    %v24 = vld [vmem:[%s0 + $0x20] sm:$0xf]
    %v25 = vld [vmem:[%s0 + $0x24] sm:$0xf]
    %v26 = vld [vmem:[%s0 + $0x28] sm:$0xf]
    %v27 = vld [vmem:[%s0 + $0x2c] sm:$0xf]
    %v28 = vld [vmem:[%s0 + $0x30] sm:$0xf]
    %v29 = vld [vmem:[%s0 + $0x34] sm:$0xf]
    %v30 = vld [vmem:[%s0 + $0x38] sm:$0xf]
    %v31 = vld [vmem:[%s0 + $0x3c] sm:$0xf]
    %v32 = vld [vmem:[%s0 + $0x40] sm:$0xf]
    %v33 = vld [vmem:[%s0 + $0x44] sm:$0xf]
    %v34 = vld [vmem:[%s0 + $0x48] sm:$0xf]
    %v35 = vld [vmem:[%s0 + $0x4c] sm:$0xf]
    %v36 = vld [vmem:[%s0 + $0x50] sm:$0xf]
    %v37 = vld [vmem:[%s0 + $0x54] sm:$0xf]
    %v38 = vld [vmem:[%s0 + $0x58] sm:$0xf]
    %v39 = vld [vmem:[%s0 + $0x5c] sm:$0xf]
    %v40 = vld [vmem:[%s0 + $0x60] sm:$0xf]
    %v41 = vld [vmem:[%s0 + $0x64] sm:$0xf]
    %v42 = vld [vmem:[%s0 + $0x68] sm:$0xf]
    %v43 = vld [vmem:[%s0 + $0x6c] sm:$0xf]
    %v44 = vld [vmem:[%s0 + $0x70] sm:$0xf]
    %v45 = vld [vmem:[%s0 + $0x74] sm:$0xf]
    %v46 = vld [vmem:[%s0 + $0x78] sm:$0xf]
    %v47 = vld [vmem:[%s0 + $0x7c] sm:$0xf]
    %v48 = vld [vmem:[%s1] sm:$0xf]
    %v49 = vld [vmem:[%s2] sm:$0x1]
    %v51 = vperm.slane %v49, 0
    %v85 = vunpack.c.l.b16 %v16
    %v86 = vunpack.c.l.b16 %v17
    %v87 = vunpack.c.l.b16 %v18
    %v88 = vunpack.c.l.b16 %v19
    %v89 = vunpack.c.l.b16 %v20
    %v90 = vunpack.c.l.b16 %v21
    %v91 = vunpack.c.l.b16 %v22
    %v92 = vunpack.c.l.b16 %v23
    %v93 = vunpack.c.l.b16 %v24
    %v94 = vunpack.c.l.b16 %v25
    %v95 = vunpack.c.l.b16 %v26
    %v96 = vunpack.c.l.b16 %v27
    %v97 = vunpack.c.l.b16 %v28
    %v98 = vunpack.c.l.b16 %v29
    %v99 = vunpack.c.l.b16 %v30
    %v100 = vunpack.c.l.b16 %v31
    %v101 = vunpack.c.l.b16 %v32
    %v102 = vunpack.c.l.b16 %v33
    %v103 = vunpack.c.l.b16 %v34
    %v104 = vunpack.c.l.b16 %v35
    %v105 = vunpack.c.l.b16 %v36
    %v106 = vunpack.c.l.b16 %v37
    %v107 = vunpack.c.l.b16 %v38
    %v108 = vunpack.c.l.b16 %v39
    %v109 = vunpack.c.l.b16 %v40
    %v110 = vunpack.c.l.b16 %v41
    %v111 = vunpack.c.l.b16 %v42
    %v112 = vunpack.c.l.b16 %v43
    %v113 = vunpack.c.l.b16 %v44
    %v114 = vunpack.c.l.b16 %v45
    %v115 = vunpack.c.l.b16 %v46
    %v116 = vunpack.c.l.b16 %v47
    %v117 = vpack.c.b16 %v86, %v85
    %v118 = vpack.c.b16 %v88, %v87
    %v119 = vpack.c.b16 %v90, %v89
    %v120 = vpack.c.b16 %v92, %v91
    %v121 = vpack.c.b16 %v94, %v93
    %v122 = vpack.c.b16 %v96, %v95
    %v123 = vpack.c.b16 %v98, %v97
    %v124 = vpack.c.b16 %v100, %v99
    %v125 = vpack.c.b16 %v102, %v101
    %v126 = vpack.c.b16 %v104, %v103
    %v127 = vpack.c.b16 %v106, %v105
    %v128 = vpack.c.b16 %v108, %v107
    %v129 = vpack.c.b16 %v110, %v109
    %v130 = vpack.c.b16 %v112, %v111
    %v131 = vpack.c.b16 %v114, %v113
    %v132 = vpack.c.b16 %v116, %v115
    %vm133 = vcmask 64512
    %v135 = vsel %vm133, %v117, 0
    %v138 = vsel %vm133, %v118, 0
    %v141 = vsel %vm133, %v119, 0
    %v144 = vsel %vm133, %v120, 0
    %v147 = vsel %vm133, %v121, 0
    %v150 = vsel %vm133, %v122, 0
    %v153 = vsel %vm133, %v123, 0
    %v156 = vsel %vm133, %v124, 0
    %v159 = vsel %vm133, %v125, 0
    %v162 = vsel %vm133, %v126, 0
    %v165 = vsel %vm133, %v127, 0
    %v168 = vsel %vm133, %v128, 0
    %v171 = vsel %vm133, %v129, 0
    %v174 = vsel %vm133, %v130, 0
    %v177 = vsel %vm133, %v131, 0
    %v180 = vsel %vm133, %v132, 0
    %vm182 = vcmask 1043456
    %v184 = vsel %vm182, %v48, 0
    %186 = vmatpush.bf16.msra.mxu0 0
    %187 = vmatpush.bf16.msra.mxu0 0
    %188 = vmatpush.bf16.msra.mxu0 0
    %189 = vmatpush.bf16.msra.mxu0 0
    %190 = vmatpush.bf16.msra.mxu0 0
    %191 = vmatpush.bf16.msra.mxu0 0
    %192 = vmatpush.bf16.msra.mxu0 0
    %193 = vmatpush.bf16.msra.mxu0 %v184
    %194 = vmatmul.bf16.gmra.mxu0 %v135
    %v195 = vpop.f32.mrf.mxu0
    %v196 = vadd.f32 %v51, %v195
    %v197 = vpop.f32.mrf.mxu0
    %v198 = vadd.f32 %v51, %v197
    %199 = vmatmul.bf16.gmra.mxu0 %v138
    %v200 = vpop.f32.mrf.mxu0
    %v201 = vadd.f32 %v51, %v200
    %v202 = vpop.f32.mrf.mxu0
    %v203 = vadd.f32 %v51, %v202
    %204 = vmatmul.bf16.gmra.mxu0 %v141
    %v205 = vpop.f32.mrf.mxu0
    %v206 = vadd.f32 %v51, %v205
    %v207 = vpop.f32.mrf.mxu0
    %v208 = vadd.f32 %v51, %v207
    %209 = vmatmul.bf16.gmra.mxu0 %v144
    %v210 = vpop.f32.mrf.mxu0
    %v211 = vadd.f32 %v51, %v210
    %v212 = vpop.f32.mrf.mxu0
    %v213 = vadd.f32 %v51, %v212
    %214 = vmatmul.bf16.gmra.mxu0 %v147
    %v215 = vpop.f32.mrf.mxu0
    %v216 = vadd.f32 %v51, %v215
    %v217 = vpop.f32.mrf.mxu0
    %v218 = vadd.f32 %v51, %v217
    %219 = vmatmul.bf16.gmra.mxu0 %v150
    %v220 = vpop.f32.mrf.mxu0
    %v221 = vadd.f32 %v51, %v220
    %v222 = vpop.f32.mrf.mxu0
    %v223 = vadd.f32 %v51, %v222
    %224 = vmatmul.bf16.gmra.mxu0 %v153
    %v225 = vpop.f32.mrf.mxu0
    %v226 = vadd.f32 %v51, %v225
    %v227 = vpop.f32.mrf.mxu0
    %v228 = vadd.f32 %v51, %v227
    %229 = vmatmul.bf16.gmra.mxu0 %v156
    %v230 = vpop.f32.mrf.mxu0
    %v231 = vadd.f32 %v51, %v230
    %v232 = vpop.f32.mrf.mxu0
    %v233 = vadd.f32 %v51, %v232
    %234 = vmatmul.bf16.gmra.mxu0 %v159
    %v235 = vpop.f32.mrf.mxu0
    %v236 = vadd.f32 %v51, %v235
    %v237 = vpop.f32.mrf.mxu0
    %v238 = vadd.f32 %v51, %v237
    %239 = vmatmul.bf16.gmra.mxu0 %v162
    %v240 = vpop.f32.mrf.mxu0
    %v241 = vadd.f32 %v51, %v240
    %v242 = vpop.f32.mrf.mxu0
    %v243 = vadd.f32 %v51, %v242
    %244 = vmatmul.bf16.gmra.mxu0 %v165
    %v245 = vpop.f32.mrf.mxu0
    %v246 = vadd.f32 %v51, %v245
    %v247 = vpop.f32.mrf.mxu0
    %v248 = vadd.f32 %v51, %v247
    %249 = vmatmul.bf16.gmra.mxu0 %v168
    %v250 = vpop.f32.mrf.mxu0
    %v251 = vadd.f32 %v51, %v250
    %v252 = vpop.f32.mrf.mxu0
    %v253 = vadd.f32 %v51, %v252
    %254 = vmatmul.bf16.gmra.mxu0 %v171
    %v255 = vpop.f32.mrf.mxu0
    %v256 = vadd.f32 %v51, %v255
    %v257 = vpop.f32.mrf.mxu0
    %v258 = vadd.f32 %v51, %v257
    %259 = vmatmul.bf16.gmra.mxu0 %v174
    %v260 = vpop.f32.mrf.mxu0
    %v261 = vadd.f32 %v51, %v260
    %v262 = vpop.f32.mrf.mxu0
    %v263 = vadd.f32 %v51, %v262
    %264 = vmatmul.bf16.gmra.mxu0 %v177
    %v265 = vpop.f32.mrf.mxu0
    %v266 = vadd.f32 %v51, %v265
    %v267 = vpop.f32.mrf.mxu0
    %v268 = vadd.f32 %v51, %v267
    %269 = vmatmul.bf16.gmra.mxu0 %v180
    %v270 = vpop.f32.mrf.mxu0
    %v271 = vadd.f32 %v51, %v270
    %v272 = vpop.f32.mrf.mxu0
    %v273 = vadd.f32 %v51, %v272
    %274 = vdwg.mxu0
    %v275 = vpack.c.bf16 %v196, %v196
    %v276 = vpack.c.bf16 %v198, %v198
    %v277 = vpack.c.bf16 %v201, %v201
    %v278 = vpack.c.bf16 %v203, %v203
    %v279 = vpack.c.bf16 %v206, %v206
    %v280 = vpack.c.bf16 %v208, %v208
    %v281 = vpack.c.bf16 %v211, %v211
    %v282 = vpack.c.bf16 %v213, %v213
    %v283 = vpack.c.bf16 %v216, %v216
    %v284 = vpack.c.bf16 %v218, %v218
    %v285 = vpack.c.bf16 %v221, %v221
    %v286 = vpack.c.bf16 %v223, %v223
    %v287 = vpack.c.bf16 %v226, %v226
    %v288 = vpack.c.bf16 %v228, %v228
    %v289 = vpack.c.bf16 %v231, %v231
    %v290 = vpack.c.bf16 %v233, %v233
    %v291 = vpack.c.bf16 %v236, %v236
    %v292 = vpack.c.bf16 %v238, %v238
    %v293 = vpack.c.bf16 %v241, %v241
    %v294 = vpack.c.bf16 %v243, %v243
    %v295 = vpack.c.bf16 %v246, %v246
    %v296 = vpack.c.bf16 %v248, %v248
    %v297 = vpack.c.bf16 %v251, %v251
    %v298 = vpack.c.bf16 %v253, %v253
    %v299 = vpack.c.bf16 %v256, %v256
    %v300 = vpack.c.bf16 %v258, %v258
    %v301 = vpack.c.bf16 %v261, %v261
    %v302 = vpack.c.bf16 %v263, %v263
    %v303 = vpack.c.bf16 %v266, %v266
    %v304 = vpack.c.bf16 %v268, %v268
    %v305 = vpack.c.bf16 %v271, %v271
    %v306 = vpack.c.bf16 %v273, %v273
    %307 = vst [vmem:[#allocation2] sm:$0xf] %v275
    %308 = vst [vmem:[#allocation2 + $0x4] sm:$0xf] %v276
    %309 = vst [vmem:[#allocation2 + $0x8] sm:$0xf] %v277
    %310 = vst [vmem:[#allocation2 + $0xc] sm:$0xf] %v278
    %311 = vst [vmem:[#allocation2 + $0x10] sm:$0xf] %v279
    %312 = vst [vmem:[#allocation2 + $0x14] sm:$0xf] %v280
    %313 = vst [vmem:[#allocation2 + $0x18] sm:$0xf] %v281
    %314 = vst [vmem:[#allocation2 + $0x1c] sm:$0xf] %v282
    %315 = vst [vmem:[#allocation2 + $0x20] sm:$0xf] %v283
    %316 = vst [vmem:[#allocation2 + $0x24] sm:$0xf] %v284
    %317 = vst [vmem:[#allocation2 + $0x28] sm:$0xf] %v285
    %318 = vst [vmem:[#allocation2 + $0x2c] sm:$0xf] %v286
    %319 = vst [vmem:[#allocation2 + $0x30] sm:$0xf] %v287
    %320 = vst [vmem:[#allocation2 + $0x34] sm:$0xf] %v288
    %321 = vst [vmem:[#allocation2 + $0x38] sm:$0xf] %v289
    %322 = vst [vmem:[#allocation2 + $0x3c] sm:$0xf] %v290
    %323 = vst [vmem:[#allocation2 + $0x40] sm:$0xf] %v291
    %324 = vst [vmem:[#allocation2 + $0x44] sm:$0xf] %v292
    %325 = vst [vmem:[#allocation2 + $0x48] sm:$0xf] %v293
    %326 = vst [vmem:[#allocation2 + $0x4c] sm:$0xf] %v294
    %327 = vst [vmem:[#allocation2 + $0x50] sm:$0xf] %v295
    %328 = vst [vmem:[#allocation2 + $0x54] sm:$0xf] %v296
    %329 = vst [vmem:[#allocation2 + $0x58] sm:$0xf] %v297
    %330 = vst [vmem:[#allocation2 + $0x5c] sm:$0xf] %v298
    %331 = vst [vmem:[#allocation2 + $0x60] sm:$0xf] %v299
    %332 = vst [vmem:[#allocation2 + $0x64] sm:$0xf] %v300
    %333 = vst [vmem:[#allocation2 + $0x68] sm:$0xf] %v301
    %334 = vst [vmem:[#allocation2 + $0x6c] sm:$0xf] %v302
    %335 = vst [vmem:[#allocation2 + $0x70] sm:$0xf] %v303
    %336 = vst [vmem:[#allocation2 + $0x74] sm:$0xf] %v304
    %337 = vst [vmem:[#allocation2 + $0x78] sm:$0xf] %v305
    %338 = vst [vmem:[#allocation2 + $0x7c] sm:$0xf] %v306
    // Predicated region
    $region14: #{tpu_custom_call.1} parent=1 // pred_check
      _
    $region15: #{tpu_custom_call.1} parent=1 // pred_check_branch
      %340 = sbr.rel (0) target = $region17
    $region16: #{tpu_custom_call.1} parent=1 // pred_region
      %342 = vsyncadd [#allocation3], 0
      %s343 = sshll.u32 [#allocation2], 4
      %s344 = int_to_ptr.vmem [resolvable:$true] %s343
      %s345 = sshll.u32 %s3, 4
      %s346 = int_to_ptr.hbm [resolvable:$true] %s345
      %351 = dma.vmem_to_hbm [thread:$0]  %s344, 2048, %s346, [#allocation3], 64, 64, 4
    $region17: #{tpu_custom_call.1} parent=1 // pred_fallthru
      _
    // Predicated region
    $region18: #{tpu_custom_call.1} parent=1 // pred_check
      _
    $region19: #{tpu_custom_call.1} parent=1 // pred_check_branch
      %353 = sbr.rel (0) target = $region21
    $region20: #{tpu_custom_call.1} parent=1 // pred_region
      %355 = dma.done [#allocation3], 2048
    $region21: #{tpu_custom_call.1} parent=1 // pred_fallthru
      _
    %356 = vsyncpa [#allocation3], 1

</llo_original>
